<compile_context>
chip_gen: v6e
topology: v6e:2x2x1
jax: 0.10.0
libtpu: 0.0.40
codegen_flags: <defaults>
</compile_context>

<pallas_src>
import functools

import jax
import jax.numpy as jnp
from jax import lax
from jax.experimental import pallas as pl
from jax.experimental.pallas import tpu as pltpu

_LANE = 128
_SUBLANE = 8


def _round_up(x, m):
    return (x + m - 1) // m * m


def _vmem_capacity_bytes():
    try:
        return int(pltpu.get_tpu_info().vmem_capacity_bytes)
    except Exception:
        return 64 << 20  # conservative (v7x) default


# ----------------------------------------------------------------------------
# Kernels
# ----------------------------------------------------------------------------
def _lora_replace_kernel(x_ref, a_ref, b_ref, o_ref, xa_ref, *, scaling, cd):
    # combine_mode == 'replace': output is only the remote LoRA result.
    # x@A depends only on the M-tile index -> computed once per M tile
    # (j == 0) into VMEM scratch and reused for every N tile.
    @pl.when(pl.program_id(1) == 0)
    def _():
        xa_ref[...] = jnp.dot(x_ref[...].astype(cd), a_ref[...],
                              preferred_element_type=jnp.float32)

    delta = jnp.dot(xa_ref[...].astype(cd), b_ref[...],
                    preferred_element_type=jnp.float32)
    o_ref[...] = (delta * scaling).astype(o_ref.dtype)


def _lora_add_delta_kernel(x_ref, w_ref, bias_ref, a_ref, b_ref, o_ref,
                           xa_ref, acc_ref, *, scaling, cd):
    # combine_mode == 'add_delta': base Linear (accumulated over the K grid
    # axis) + remote LoRA delta.
    j = pl.program_id(1)
    k = pl.program_id(2)
    nk = pl.num_programs(2)
    x = x_ref[...].astype(cd)

    @pl.when(k == 0)
    def _():
        acc_ref[...] = jnp.zeros_like(acc_ref)

    # x@A depends only on (i, k): accumulate it once per M tile (j == 0) and
    # keep it resident in VMEM for the remaining N tiles.
    @pl.when((j == 0) & (k == 0))
    def _():
        xa_ref[...] = jnp.zeros_like(xa_ref)

    @pl.when(j == 0)
    def _():
        xa_ref[...] += jnp.dot(x, a_ref[...], preferred_element_type=jnp.float32)

    acc_ref[...] += jnp.dot(x, w_ref[...], preferred_element_type=jnp.float32)

    @pl.when(k == nk - 1)
    def _():
        delta = jnp.dot(xa_ref[...].astype(cd), b_ref[...],
                        preferred_element_type=jnp.float32)
        o_ref[...] = (acc_ref[...] + bias_ref[...]
                      + delta * scaling).astype(o_ref.dtype)


# ----------------------------------------------------------------------------
# pallas_call launcher
# ----------------------------------------------------------------------------
def _lora_pallas(x2d, w_p, bias_p, a_p, b_p, *, add_delta, scaling, cd,
                 tm, tn, tk, out_cols, vmem_limit, cost):
    M, H_in = x2d.shape
    r_pad = a_p.shape[1]
    gm = pl.cdiv(M, tm)
    gn = pl.cdiv(out_cols, tn)

    if add_delta:
        gk = H_in // tk
        grid = (gm, gn, gk)
        kernel = functools.partial(_lora_add_delta_kernel, scaling=scaling, cd=cd)
        in_specs = [
            pl.BlockSpec((tm, tk), lambda i, j, k: (i, k)),      # x
            pl.BlockSpec((tk, tn), lambda i, j, k: (k, j)),      # base W
            pl.BlockSpec((1, tn), lambda i, j, k: (0, j)),       # bias (f32)
            pl.BlockSpec((tk, r_pad), lambda i, j, k: (k, 0)),   # LoRA A
            pl.BlockSpec((r_pad, tn), lambda i, j, k: (0, j)),   # LoRA B
        ]
        out_specs = pl.BlockSpec((tm, tn), lambda i, j, k: (i, j))
        operands = (x2d, w_p, bias_p, a_p, b_p)
        scratch = [pltpu.VMEM((tm, r_pad), jnp.float32),   # hoisted x@A
                   pltpu.VMEM((tm, tn), jnp.float32)]      # base accumulator
        semantics = ("parallel", "arbitrary", "arbitrary")
    else:
        # 'replace': W / bias never enter the kernel -> no wasted DMA or VMEM.
        grid = (gm, gn)
        kernel = functools.partial(_lora_replace_kernel, scaling=scaling, cd=cd)
        in_specs = [
            pl.BlockSpec((tm, H_in), lambda i, j: (i, 0)),       # x
            # TODO(synk): A's block index is constant; pipeline_mode=pl.Buffered(1)
            # would drop one redundant VMEM copy once single-buffering is verified
            # on all target generations.
            pl.BlockSpec((H_in, r_pad), lambda i, j: (0, 0)),    # LoRA A
            pl.BlockSpec((r_pad, tn), lambda i, j: (0, j)),      # LoRA B
        ]
        out_specs = pl.BlockSpec((tm, tn), lambda i, j: (i, j))
        operands = (x2d, a_p, b_p)
        scratch = [pltpu.VMEM((tm, r_pad), jnp.float32)]         # hoisted x@A
        semantics = ("parallel", "arbitrary")

    return pl.pallas_call(
        kernel,
        out_shape=jax.ShapeDtypeStruct((M, out_cols), jnp.float32),
        grid_spec=pltpu.PrefetchScalarGridSpec(
            num_scalar_prefetch=0,
            grid=grid,
            in_specs=in_specs,
            out_specs=out_specs,
            scratch_shapes=scratch,
        ),
        compiler_params=pltpu.CompilerParams(
            dimension_semantics=semantics,
            vmem_limit_bytes=vmem_limit),
        cost_estimate=cost,
    )(*operands)


# ----------------------------------------------------------------------------
# Module wrapper (JAX analogue of the PyTorch class; params are plain arrays)
# ----------------------------------------------------------------------------
class RemoteLoRAWrappedModule:
    """base_out = x @ W + bias ;  remote_out = ((x @ A) @ B) * scaling."""

    def __init__(self, sub_name, w, bias, lora_a, lora_b, scaling,
                 combine_mode="replace", compute_dtype=jnp.bfloat16,
                 _force_tk=None):
        self.sub_name = sub_name
        self.combine_mode = combine_mode
        self.add_delta = (combine_mode == "add_delta")
        self.scaling = float(scaling)
        self._force_tk = _force_tk

        w = jnp.asarray(w)
        lora_a = jnp.asarray(lora_a)
        lora_b = jnp.asarray(lora_b)
        H_in, H_out = w.shape
        r = lora_a.shape[1]
        cd = jnp.dtype(compute_dtype)
        self.compute_dtype = cd
        self.H_in, self.H_out = H_in, H_out

        # LoRA rank padded to a full 128-lane width (tiny r would run both LoRA
        # matmuls at ~3% MXU efficiency and violate the lane constraint).
        self.r_pad = _round_up(max(r, 1), _LANE)

        # N geometry:
        #  * H_out < 128: 128-lane-dense out tile, slice outside the kernel.
        #  * H_out >= 128: kernel output is exactly (M, H_out); ragged N edge
        #    blocks are masked on store.
        self.out_cols = H_out if H_out >= _LANE else _LANE
        if self.add_delta:
            tn_hint = 512 if cd.itemsize <= 2 else 256
        else:
            tn_hint = 2048   # replace mode is mem/store bound: big N tiles
        self.tn = min(tn_hint, _round_up(self.out_cols, _LANE))
        gn = pl.cdiv(self.out_cols, self.tn)
        n_param = gn * self.tn   # pad params so every param block is in-bounds

        def pad2d(arr, rows, cols):
            return jnp.pad(arr, ((0, rows - arr.shape[0]),
                                 (0, cols - arr.shape[1])))

        # Pre-pad / pre-cast parameters ONCE (no per-forward host-side work).
        self.a_p = pad2d(lora_a, H_in, self.r_pad).astype(cd)
        self.b_p = pad2d(lora_b, self.r_pad, n_param).astype(cd)
        if self.add_delta:
            self.w_p = pad2d(w, H_in, n_param).astype(cd)
            self.bias_p = jnp.pad(jnp.asarray(bias).astype(jnp.float32),
                                  (0, n_param - H_out)).reshape(1, n_param)
        else:
            self.w_p = None
            self.bias_p = None

    # ---- tile selection helpers --------------------------------------------
    def _pick_tm(self, M):
        if M <= 128:
            return M                       # single (possibly ragged) M block
        if pl.cdiv(M, 256) < 2:
            return 128                     # keep >=2 parallel M blocks (megacore)
        return 256 if ((-M) % 256) <= ((-M) % 128) else 128

    def _vmem_need(self, tm, tn, tk, x_it):
        p_it = self.compute_dtype.itemsize
        r_pad = self.r_pad
        b = 2 * tm * tk * x_it                 # x tiles (double-buffered)
        b += 2 * tk * r_pad * p_it             # LoRA A tiles
        b += 2 * r_pad * tn * p_it             # LoRA B tiles
        b += 2 * tm * tn * 4                   # f32 output tiles
        b += tm * r_pad * 4                    # x@A scratch
        if self.add_delta:
            b += 2 * tk * tn * p_it            # base W tiles
            b += 2 * tn * 4                    # bias tiles
            b += tm * tn * 4                   # base accumulator scratch
        return b

    def __call__(self, x):
        lead = x.shape[:-1]
        # No host-side pad / astype: ragged M handled by the grid, cast in-kernel.
        x2d = jnp.asarray(x).reshape(-1, self.H_in)
        M = x2d.shape[0]
        x_it = x2d.dtype.itemsize

        tm = self._pick_tm(M)
        tn = self.tn
        budget = int(0.75 * _vmem_capacity_bytes())

        tk = self.H_in
        if self.add_delta:
            # K (H_in) tiling when the double-buffered plan exceeds the per-chip
            # VMEM budget (keeps 256-wide MXU output tiles on v7x's 64 MiB).
            while self._vmem_need(tm, tn, tk, x_it) > budget and tk % 256 == 0:
                tk //= 2
            if self._force_tk is not None:
                tk = self._force_tk
        else:
            # replace mode: shrink tn, then tm, if the plan would not fit.
            while self._vmem_need(tm, tn, tk, x_it) > budget and tn > 256:
                tn //= 2
            while self._vmem_need(tm, tn, tk, x_it) > budget and tm > 64:
                tm = max(64, _round_up(tm // 2, _SUBLANE))

        need = self._vmem_need(tm, tn, tk, x_it)
        vmem_limit = int(min(max(need + (4 << 20), 16 << 20), budget))

        # Advisory cost estimate (x@A counted once per M tile thanks to hoist).
        n_total = pl.cdiv(self.out_cols, tn) * tn
        flops = 2 * M * self.H_in * self.r_pad + 2 * M * self.r_pad * n_total
        bytes_acc = (x2d.size * x_it
                     + self.a_p.size * self.a_p.dtype.itemsize
                     + self.b_p.size * self.b_p.dtype.itemsize
                     + M * self.out_cols * 4)
        if self.add_delta:
            flops += 2 * M * self.H_in * n_total
            bytes_acc += (self.w_p.size * self.w_p.dtype.itemsize
                          + self.bias_p.size * 4)
        cost = pl.CostEstimate(flops=int(flops), transcendentals=0,
                               bytes_accessed=int(bytes_acc))

        out = _lora_pallas(x2d, self.w_p, self.bias_p, self.a_p, self.b_p,
                           add_delta=self.add_delta, scaling=self.scaling,
                           cd=self.compute_dtype, tm=tm, tn=tn, tk=tk,
                           out_cols=self.out_cols, vmem_limit=vmem_limit,
                           cost=cost)
        if self.out_cols != self.H_out:
            out = out[:, :self.H_out]
        return out.reshape(*lead, self.H_out)


# ----------------------------------------------------------------------------
# Demo / correctness check
# ----------------------------------------------------------------------------
if __name__ == "__main__":
    key = jax.random.PRNGKey(0)

    def make_case(k, H_in, H_out, rank, batch=2, seq=8):
        kx, kw, kb, ka, kbm = jax.random.split(k, 5)
        x = jax.random.normal(kx, (batch, seq, H_in), dtype=jnp.float32)
        w = jax.random.normal(kw, (H_in, H_out), dtype=jnp.float32) * 0.05
        bias = jax.random.normal(kb, (H_out,), dtype=jnp.float32) * 0.5
        a = jax.random.normal(ka, (H_in, rank), dtype=jnp.float32) * 0.1
        b = jax.random.normal(kbm, (rank, H_out), dtype=jnp.float32) * 0.1
        return x, w, bias, a, b

    def reference(x, w, bias, a, b, scaling, mode):
        hi = lax.Precision.HIGHEST
        x2d = x.reshape(-1, x.shape[-1]).astype(jnp.float32)
        delta = jnp.dot(jnp.dot(x2d, a, precision=hi), b, precision=hi) * scaling
        if mode == "add_delta":
            out = jnp.dot(x2d, w, precision=hi) + bias + delta
        else:
            out = delta
        return out.reshape(*x.shape[:-1], w.shape[1])

    scaling = 2.0  # lora_alpha / r
    k1, k2 = jax.random.split(key)

    # --- case 1: tiny shapes (hidden=32, rank=4) ------------------------------
    x, w, bias, a, b = make_case(k1, H_in=32, H_out=32, rank=4)

    mod_rep_f32 = RemoteLoRAWrappedModule("h.0.attn.c_attn", w, bias, a, b,
                                          scaling, combine_mode="replace",
                                          compute_dtype=jnp.float32)
    mod_add_f32 = RemoteLoRAWrappedModule("h.0.attn.c_attn", w, bias, a, b,
                                          scaling, combine_mode="add_delta",
                                          compute_dtype=jnp.float32)
    mod_add_bf16 = RemoteLoRAWrappedModule("h.0.attn.c_attn", w, bias, a, b,
                                           scaling, combine_mode="add_delta")

    out_rep = jax.block_until_ready(mod_rep_f32(x))
    out_add = jax.block_until_ready(mod_add_f32(x))
    out_add_bf16 = jax.block_until_ready(mod_add_bf16(x))

    ref_rep = reference(x, w, bias, a, b, scaling, "replace")
    ref_add = reference(x, w, bias, a, b, scaling, "add_delta")

    assert out_rep.dtype == jnp.float32 and out_add.dtype == jnp.float32
    assert out_rep.shape == ref_rep.shape and out_add.shape == ref_add.shape
    assert jnp.allclose(out_rep, ref_rep, atol=1e-2, rtol=1e-2)
    assert jnp.allclose(out_add, ref_add, atol=1e-2, rtol=1e-2)
    assert out_add_bf16.dtype == jnp.float32
    assert jnp.allclose(out_add_bf16, ref_add, atol=5e-2, rtol=5e-2)

    # --- case 2: exercise K (H_in) grid axis + ragged-N edge blocks ----------
    x2, w2, bias2, a2, b2 = make_case(k2, H_in=256, H_out=384, rank=8)
    mod_k = RemoteLoRAWrappedModule("h.1.mlp.c_fc", w2, bias2, a2, b2, scaling,
                                    combine_mode="add_delta",
                                    compute_dtype=jnp.float32, _force_tk=128)
    out_k = jax.block_until_ready(mod_k(x2))
    ref_k = reference(x2, w2, bias2, a2, b2, scaling, "add_delta")
    assert out_k.shape == ref_k.shape
    assert jnp.allclose(out_k, ref_k, atol=1e-2, rtol=1e-2)

    mod_rep2 = RemoteLoRAWrappedModule("h.1.mlp.c_fc", w2, bias2, a2, b2,
                                       scaling, combine_mode="replace",
                                       compute_dtype=jnp.float32)
    out_rep2 = jax.block_until_ready(mod_rep2(x2))
    ref_rep2 = reference(x2, w2, bias2, a2, b2, scaling, "replace")
    assert jnp.allclose(out_rep2, ref_rep2, atol=1e-2, rtol=1e-2)

    print("KERNEL_OK")
</pallas_src>

<mosaic_0001>
module attributes {stable_mosaic.version = 11 : i64} {
  func.func @_lora_replace_kernel(%arg0: i32, %arg1: i32, %arg2: memref<16x32xf32, #tpu.memory_space<vmem>>, %arg3: memref<32x128xf32, #tpu.memory_space<vmem>>, %arg4: memref<128x128xf32, #tpu.memory_space<vmem>>, %arg5: memref<16x128xf32, #tpu.memory_space<vmem>>, %arg6: memref<16x128xf32, #tpu.memory_space<vmem>>) attributes {dimension_semantics = [#tpu.dimension_semantics<parallel>, #tpu.dimension_semantics<arbitrary>], iteration_bounds = array<i64: 1, 1>, scalar_prefetch = 0 : i64, scratch_operands = 1 : i64, tpu.core_type = #tpu.core_type<tc>, window_params = [{transform_indices = @transform_0, window_bounds = array<i64: 16, 32>}, {pipeline_mode = #tpu.pipeline_mode<synchronous>, transform_indices = @transform_1, window_bounds = array<i64: 32, 128>}, {transform_indices = @transform_2, window_bounds = array<i64: 128, 128>}, {transform_indices = @transform_3, window_bounds = array<i64: 16, 128>}]} {
    %c0_i32 = arith.constant 0 : i32
    %0 = arith.cmpi eq, %arg1, %c0_i32 : i32
    %1 = arith.extui %0 : i1 to i32
    %c0_i32_0 = arith.constant 0 : i32
    %2 = arith.cmpi ne, %1, %c0_i32_0 : i32
    scf.if %2 {
      %c0_7 = arith.constant 0 : index
      %c0_8 = arith.constant 0 : index
      %9 = vector.load %arg2[%c0_7, %c0_8] : memref<16x32xf32, #tpu.memory_space<vmem>>, vector<16x32xf32>
      %c0_9 = arith.constant 0 : index
      %c0_10 = arith.constant 0 : index
      %10 = vector.load %arg3[%c0_9, %c0_10] : memref<32x128xf32, #tpu.memory_space<vmem>>, vector<32x128xf32>
      %cst_11 = arith.constant dense<0.000000e+00> : vector<16x128xf32>
      %11 = tpu.matmul %9, %10, %cst_11 {dimension_numbers = #tpu.dot_dimension_numbers<[1], [0], [0], [1], [0, 0, 1, 1], [], []>} : vector<16x32xf32>, vector<32x128xf32>, vector<16x128xf32> -> vector<16x128xf32>
      %c0_12 = arith.constant 0 : index
      %c0_13 = arith.constant 0 : index
      %12 = vector.load %arg6[%c0_12, %c0_13] : memref<16x128xf32, #tpu.memory_space<vmem>>, vector<16x128xf32>
      tpu.vector_store %arg6[%c0_12, %c0_13], %11 {strides = array<i32>} : memref<16x128xf32, #tpu.memory_space<vmem>>, vector<16x128xf32>,
    } else {
    }
    %c0 = arith.constant 0 : index
    %c0_1 = arith.constant 0 : index
    %3 = vector.load %arg6[%c0, %c0_1] : memref<16x128xf32, #tpu.memory_space<vmem>>, vector<16x128xf32>
    %c0_2 = arith.constant 0 : index
    %c0_3 = arith.constant 0 : index
    %4 = vector.load %arg4[%c0_2, %c0_3] : memref<128x128xf32, #tpu.memory_space<vmem>>, vector<128x128xf32>
    %cst = arith.constant dense<0.000000e+00> : vector<16x128xf32>
    %5 = tpu.matmul %3, %4, %cst {dimension_numbers = #tpu.dot_dimension_numbers<[1], [0], [0], [1], [0, 0, 1, 1], [], []>} : vector<16x128xf32>, vector<128x128xf32>, vector<16x128xf32> -> vector<16x128xf32>
    %cst_4 = arith.constant 2.000000e+00 : f32
    %6 = vector.broadcast %cst_4 : f32 to vector<16x128xf32>
    %7 = arith.mulf %5, %6 : vector<16x128xf32>
    %c0_5 = arith.constant 0 : index
    %c0_6 = arith.constant 0 : index
    %8 = vector.load %arg5[%c0_5, %c0_6] : memref<16x128xf32, #tpu.memory_space<vmem>>, vector<16x128xf32>
    tpu.vector_store %arg5[%c0_5, %c0_6], %7 {strides = array<i32>} : memref<16x128xf32, #tpu.memory_space<vmem>>, vector<16x128xf32>,
    return
  }
  func.func @transform_0(%arg0: i32, %arg1: i32) -> (i32, i32) {
    %c0_i32 = arith.constant 0 : i32
    %c0_i32_0 = arith.constant 0 : i32
    return %arg0, %c0_i32 : i32, i32
  }
  func.func @transform_1(%arg0: i32, %arg1: i32) -> (i32, i32) {
    %c0_i32 = arith.constant 0 : i32
    %c0_i32_0 = arith.constant 0 : i32
    %c0_i32_1 = arith.constant 0 : i32
    return %c0_i32, %c0_i32_0 : i32, i32
  }
  func.func @transform_2(%arg0: i32, %arg1: i32) -> (i32, i32) {
    %c0_i32 = arith.constant 0 : i32
    %c0_i32_0 = arith.constant 0 : i32
    return %c0_i32, %arg1 : i32, i32
  }
  func.func @transform_3(%arg0: i32, %arg1: i32) -> (i32, i32) {
    %c0_i32 = arith.constant 0 : i32
    return %arg0, %arg1 : i32, i32
  }
}

</mosaic_0001>

<llo_original>
// kernel: tpu_custom_call.1
$region0: #{tpu_custom_call.1}
  #allocation0 [shape = 'u32[]', space=smem, size = 0x4, offset = 0x4, fixed_abs, tag = 'smem constant byte address 0x4 - core index']
  #allocation1 [shape = 'u32[144,128]{1,0:T(1,128)}', space=vmem, size = 0x12000, scoped, tag = 'internal scratch']
  #allocation2 [shape = 'f32[16,128]{1,0:T(8,128)}', space=vmem, size = 0x2000, scoped, tag = 'scratch operand']
  %s0 = inlined_call_operand.hbm [shape: f32[16,32], index: 0, kind: input, shape index: {}]
  %s1 = inlined_call_operand.hbm [shape: f32[32,128], index: 1, kind: input, shape index: {}]
  %s2 = inlined_call_operand.hbm [shape: f32[128,128], index: 2, kind: input, shape index: {}]
  %s3 = inlined_call_operand.hbm [shape: f32[16,128], index: 3, kind: output, shape index: {}]
  %s4 = sld [smem:[#allocation0]]
  $region38: #{tpu_custom_call.1} parent=0
    _
  %s6 = ssub.s32 1, %s4
  %s7 = scalar_select 0, %s6, %s4
  $region1: #{tpu_custom_call.1} parent=0
    #allocation3 [shape = 'u8[8192]{0}', space=vmem, size = 0x2000, scoped, tag = 'input window, operand 0, single buffered']
    #allocation4 [shape = 's32[1]{0}', space=sflag, size = 0x4, scoped, tag = 'scoped memory for tpu_custom_call.1']
    #allocation5 [shape = 's32[1]{0}', space=sflag, size = 0x4, scoped, tag = 'scoped memory for tpu_custom_call.1']
    #allocation6 [shape = 'u8[16384]{0}', space=vmem, size = 0x4000, scoped, tag = 'input window, operand 1, single buffered']
    #allocation7 [shape = 's32[1]{0}', space=sflag, size = 0x4, scoped, tag = 'scoped memory for tpu_custom_call.1']
    #allocation8 [shape = 'u8[65536]{0}', space=vmem, size = 0x10000, scoped, tag = 'input window, operand 2, single buffered']
    #allocation9 [shape = 'u8[8192]{0}', space=vmem, size = 0x2000, scoped, tag = 'output window, operand 0, single buffered']
    %8 = vsyncpa [#allocation4], 0
    %9 = vsyncpa [#allocation7], 0
    %10 = vsyncpa [#allocation5], 0
    // Predicated region
    $region2: #{tpu_custom_call.1} parent=1 // pred_check
      _
    $region3: #{tpu_custom_call.1} parent=1 // pred_check_branch
      %12 = sbr.rel (0) target = $region5
    $region4: #{tpu_custom_call.1} parent=1 // pred_region
      %s14 = ssub.s32 256, 256
      %15 = vsyncadd [#allocation4], %s14
      %s16 = sshll.u32 [#allocation3], 4
      %s17 = int_to_ptr.vmem [resolvable:$true] %s16
      %22 = dma.hbm_to_vmem [thread:$0]  %s0, 256, %s17, [#allocation4], 128, 128, 8
    $region5: #{tpu_custom_call.1} parent=1 // pred_fallthru
      _
    // Predicated region
    $region6: #{tpu_custom_call.1} parent=1 // pred_check
      _
    $region7: #{tpu_custom_call.1} parent=1 // pred_check_branch
      %24 = sbr.rel (0) target = $region9
    $region8: #{tpu_custom_call.1} parent=1 // pred_region
      %s26 = ssub.s32 512, 512
      %27 = vsyncadd [#allocation7], %s26
      %s28 = sshll.u32 [#allocation6], 4
      %s29 = int_to_ptr.vmem [resolvable:$true] %s28
      %34 = dma.hbm_to_vmem [thread:$0]  %s1, 512, %s29, [#allocation7], 128, 128, 8
    $region9: #{tpu_custom_call.1} parent=1 // pred_fallthru
      _
    // Predicated region
    $region10: #{tpu_custom_call.1} parent=1 // pred_check
      _
    $region11: #{tpu_custom_call.1} parent=1 // pred_check_branch
      %36 = sbr.rel (0) target = $region13
    $region12: #{tpu_custom_call.1} parent=1 // pred_region
      %s38 = ssub.s32 2048, 2048
      %39 = vsyncadd [#allocation7], %s38
      %s40 = sshll.u32 [#allocation8], 4
      %s41 = int_to_ptr.vmem [resolvable:$true] %s40
      %46 = dma.hbm_to_vmem [thread:$0]  %s2, 2048, %s41, [#allocation7], 128, 128, 8
    $region13: #{tpu_custom_call.1} parent=1 // pred_fallthru
      _
    // Predicated region
    $region14: #{tpu_custom_call.1} parent=1 // pred_check
      _
    $region15: #{tpu_custom_call.1} parent=1 // pred_check_branch
      %48 = sbr.rel (0) target = $region17
    $region16: #{tpu_custom_call.1} parent=1 // pred_region
      %49 = dma.done [#allocation4], 256
    $region17: #{tpu_custom_call.1} parent=1 // pred_fallthru
      _
    // Predicated region
    $region18: #{tpu_custom_call.1} parent=1 // pred_check
      _
    $region19: #{tpu_custom_call.1} parent=1 // pred_check_branch
      %51 = sbr.rel (0) target = $region21
    $region20: #{tpu_custom_call.1} parent=1 // pred_region
      %52 = dma.done [#allocation7], 512
    $region21: #{tpu_custom_call.1} parent=1 // pred_fallthru
      _
    // Predicated region
    $region22: #{tpu_custom_call.1} parent=1 // pred_check
      _
    $region23: #{tpu_custom_call.1} parent=1 // pred_check_branch
      %54 = sbr.rel (0) target = $region25
    $region24: #{tpu_custom_call.1} parent=1 // pred_region
      %55 = dma.done [#allocation7], 2048
    $region25: #{tpu_custom_call.1} parent=1 // pred_fallthru
      _
    %p56 = scmp.eq.s32.totalorder 0, 0
    // Predicated region
    $region26: #{tpu_custom_call.1} parent=1 // pred_check
      %p57 = pneg %p56
    $region27: #{tpu_custom_call.1} parent=1 // pred_check_branch
      %59 = sbr.rel (%p57) target = $region29
    $region28: #{tpu_custom_call.1} parent=1 // pred_region
      %v60 = vld [vmem:[#allocation3] sm:$0xff]
      %v61 = vld [vmem:[#allocation3 + $0x8] sm:$0xff]
      %v62 = vld [vmem:[#allocation6] sm:$0xff]
      %v63 = vld [vmem:[#allocation6 + $0x8] sm:$0xff]
      %v64 = vld [vmem:[#allocation6 + $0x10] sm:$0xff]
      %v65 = vld [vmem:[#allocation6 + $0x18] sm:$0xff]
      %vm66 = vcmask 261120
      %v68 = vsel %vm66, %v60, 0
      %v71 = vsel %vm66, %v61, 0
      %73 = vmatprep.subr.mxu0 0.0
      %74 = vmatpush1.msra.mxu0 0.0
      %75 = vmatprep.subr.mxu0 0.0
      %76 = vmatpush1.msra.mxu0 0.0
      %77 = vmatprep.subr.mxu0 0.0
      %78 = vmatpush1.msra.mxu0 0.0
      %79 = vmatprep.subr.mxu0 0.0
      %80 = vmatpush1.msra.mxu0 0.0
      %81 = vmatprep.subr.mxu0 0.0
      %82 = vmatpush1.msra.mxu0 0.0
      %83 = vmatprep.subr.mxu0 0.0
      %84 = vmatpush1.msra.mxu0 0.0
      %85 = vmatprep.subr.mxu0 0.0
      %86 = vmatpush1.msra.mxu0 0.0
      %87 = vmatprep.subr.mxu0 0.0
      %88 = vmatpush1.msra.mxu0 0.0
      %89 = vmatprep.subr.mxu0 0.0
      %90 = vmatpush1.msra.mxu0 0.0
      %91 = vmatprep.subr.mxu0 0.0
      %92 = vmatpush1.msra.mxu0 0.0
      %93 = vmatprep.subr.mxu0 0.0
      %94 = vmatpush1.msra.mxu0 0.0
      %95 = vmatprep.subr.mxu0 0.0
      %96 = vmatpush1.msra.mxu0 0.0
      %97 = vmatprep.subr.mxu0 0.0
      %98 = vmatpush1.msra.mxu0 %v65
      %99 = vmatprep.subr.mxu0 0.0
      %100 = vmatpush1.msra.mxu0 %v64
      %101 = vmatprep.subr.mxu0 0.0
      %102 = vmatpush1.msra.mxu0 %v63
      %103 = vmatprep.subr.mxu0 0.0
      %104 = vmatpush1.msra.mxu0 %v62
      %105 = vmatprep.subr.mxu0 0.0
      %106 = vmatpush2.msra.mxu0 0.0
      %107 = vmatprep.subr.mxu0 0.0
      %108 = vmatpush2.msra.mxu0 0.0
      %109 = vmatprep.subr.mxu0 0.0
      %110 = vmatpush2.msra.mxu0 0.0
      %111 = vmatprep.subr.mxu0 0.0
      %112 = vmatpush2.msra.mxu0 0.0
      %113 = vmatprep.subr.mxu0 0.0
      %114 = vmatpush2.msra.mxu0 0.0
      %115 = vmatprep.subr.mxu0 0.0
      %116 = vmatpush2.msra.mxu0 0.0
      %117 = vmatprep.subr.mxu0 0.0
      %118 = vmatpush2.msra.mxu0 0.0
      %119 = vmatprep.subr.mxu0 0.0
      %120 = vmatpush2.msra.mxu0 0.0
      %121 = vmatprep.subr.mxu0 0.0
      %122 = vmatpush2.msra.mxu0 0.0
      %123 = vmatprep.subr.mxu0 0.0
      %124 = vmatpush2.msra.mxu0 0.0
      %125 = vmatprep.subr.mxu0 0.0
      %126 = vmatpush2.msra.mxu0 0.0
      %127 = vmatprep.subr.mxu0 0.0
      %128 = vmatpush2.msra.mxu0 0.0
      %129 = vmatprep.subr.mxu0 0.0
      %130 = vmatpush2.msra.mxu0 0.0
      %131 = vmatprep.subr.mxu0 0.0
      %132 = vmatpush2.msra.mxu0 0.0
      %133 = vmatprep.subr.mxu0 0.0
      %134 = vmatpush2.msra.mxu0 0.0
      %135 = vmatprep.subr.mxu0 0.0
      %136 = vmatpush2.msra.mxu0 0.0
      %137 = vmatprep.mubr.f32.mxu0 0.0
      %138 = vmatmul.mubr.f32.gmra.mxu0 %v68
      %v139 = vpop.f32.mrf.mxu0
      %v140 = vadd.f32 0.0, %v139
      %v141 = vpop.f32.mrf.mxu0
      %142 = vmatprep.mubr.f32.mxu0 0.0
      %143 = vmatmul.mubr.f32.gmra.mxu0 %v71
      %v144 = vpop.f32.mrf.mxu0
      %v145 = vadd.f32 0.0, %v144
      %v146 = vpop.f32.mrf.mxu0
      %147 = vdwg.mxu0
      %148 = vst [vmem:[#allocation2] sm:$0xff] %v140
      %149 = vst [vmem:[#allocation2 + $0x8] sm:$0xff] %v145
    $region29: #{tpu_custom_call.1} parent=1 // pred_fallthru
      _
    %v150 = vld [vmem:[#allocation2] sm:$0xff]
    %v151 = vld [vmem:[#allocation2 + $0x8] sm:$0xff]
    %v152 = vld [vmem:[#allocation8] sm:$0xff]
    %v153 = vld [vmem:[#allocation8 + $0x8] sm:$0xff]
    %v154 = vld [vmem:[#allocation8 + $0x10] sm:$0xff]
    %v155 = vld [vmem:[#allocation8 + $0x18] sm:$0xff]
    %v156 = vld [vmem:[#allocation8 + $0x20] sm:$0xff]
    %v157 = vld [vmem:[#allocation8 + $0x28] sm:$0xff]
    %v158 = vld [vmem:[#allocation8 + $0x30] sm:$0xff]
    %v159 = vld [vmem:[#allocation8 + $0x38] sm:$0xff]
    %v160 = vld [vmem:[#allocation8 + $0x40] sm:$0xff]
    %v161 = vld [vmem:[#allocation8 + $0x48] sm:$0xff]
    %v162 = vld [vmem:[#allocation8 + $0x50] sm:$0xff]
    %v163 = vld [vmem:[#allocation8 + $0x58] sm:$0xff]
    %v164 = vld [vmem:[#allocation8 + $0x60] sm:$0xff]
    %v165 = vld [vmem:[#allocation8 + $0x68] sm:$0xff]
    %v166 = vld [vmem:[#allocation8 + $0x70] sm:$0xff]
    %v167 = vld [vmem:[#allocation8 + $0x78] sm:$0xff]
    %168 = vmatprep.subr.mxu0 0.0
    %169 = vmatpush1.msra.mxu0 %v167
    %170 = vmatprep.subr.mxu0 0.0
    %171 = vmatpush1.msra.mxu0 %v166
    %172 = vmatprep.subr.mxu0 0.0
    %173 = vmatpush1.msra.mxu0 %v165
    %174 = vmatprep.subr.mxu0 0.0
    %175 = vmatpush1.msra.mxu0 %v164
    %176 = vmatprep.subr.mxu0 0.0
    %177 = vmatpush1.msra.mxu0 %v163
    %178 = vmatprep.subr.mxu0 0.0
    %179 = vmatpush1.msra.mxu0 %v162
    %180 = vmatprep.subr.mxu0 0.0
    %181 = vmatpush1.msra.mxu0 %v161
    %182 = vmatprep.subr.mxu0 0.0
    %183 = vmatpush1.msra.mxu0 %v160
    %184 = vmatprep.subr.mxu0 0.0
    %185 = vmatpush1.msra.mxu0 %v159
    %186 = vmatprep.subr.mxu0 0.0
    %187 = vmatpush1.msra.mxu0 %v158
    %188 = vmatprep.subr.mxu0 0.0
    %189 = vmatpush1.msra.mxu0 %v157
    %190 = vmatprep.subr.mxu0 0.0
    %191 = vmatpush1.msra.mxu0 %v156
    %192 = vmatprep.subr.mxu0 0.0
    %193 = vmatpush1.msra.mxu0 %v155
    %194 = vmatprep.subr.mxu0 0.0
    %195 = vmatpush1.msra.mxu0 %v154
    %196 = vmatprep.subr.mxu0 0.0
    %197 = vmatpush1.msra.mxu0 %v153
    %198 = vmatprep.subr.mxu0 0.0
    %199 = vmatpush1.msra.mxu0 %v152
    %200 = vmatprep.subr.mxu0 0.0
    %201 = vmatpush2.msra.mxu0 0.0
    %202 = vmatprep.subr.mxu0 0.0
    %203 = vmatpush2.msra.mxu0 0.0
    %204 = vmatprep.subr.mxu0 0.0
    %205 = vmatpush2.msra.mxu0 0.0
    %206 = vmatprep.subr.mxu0 0.0
    %207 = vmatpush2.msra.mxu0 0.0
    %208 = vmatprep.subr.mxu0 0.0
    %209 = vmatpush2.msra.mxu0 0.0
    %210 = vmatprep.subr.mxu0 0.0
    %211 = vmatpush2.msra.mxu0 0.0
    %212 = vmatprep.subr.mxu0 0.0
    %213 = vmatpush2.msra.mxu0 0.0
    %214 = vmatprep.subr.mxu0 0.0
    %215 = vmatpush2.msra.mxu0 0.0
    %216 = vmatprep.subr.mxu0 0.0
    %217 = vmatpush2.msra.mxu0 0.0
    %218 = vmatprep.subr.mxu0 0.0
    %219 = vmatpush2.msra.mxu0 0.0
    %220 = vmatprep.subr.mxu0 0.0
    %221 = vmatpush2.msra.mxu0 0.0
    %222 = vmatprep.subr.mxu0 0.0
    %223 = vmatpush2.msra.mxu0 0.0
    %224 = vmatprep.subr.mxu0 0.0
    %225 = vmatpush2.msra.mxu0 0.0
    %226 = vmatprep.subr.mxu0 0.0
    %227 = vmatpush2.msra.mxu0 0.0
    %228 = vmatprep.subr.mxu0 0.0
    %229 = vmatpush2.msra.mxu0 0.0
    %230 = vmatprep.subr.mxu0 0.0
    %231 = vmatpush2.msra.mxu0 0.0
    %232 = vmatprep.mubr.f32.mxu0 0.0
    %233 = vmatmul.mubr.f32.gmra.mxu0 %v150
    %v234 = vpop.f32.mrf.mxu0
    %v235 = vadd.f32 0.0, %v234
    %v236 = vpop.f32.mrf.mxu0
    %237 = vmatprep.mubr.f32.mxu0 0.0
    %238 = vmatmul.mubr.f32.gmra.mxu0 %v151
    %v239 = vpop.f32.mrf.mxu0
    %v240 = vadd.f32 0.0, %v239
    %v241 = vpop.f32.mrf.mxu0
    %242 = vdwg.mxu0
    %v243 = vmul.f32 %v235, 2.0
    %v244 = vmul.f32 %v240, 2.0
    %245 = vst [vmem:[#allocation9] sm:$0xff] %v243
    %246 = vst [vmem:[#allocation9 + $0x8] sm:$0xff] %v244
    // Predicated region
    $region30: #{tpu_custom_call.1} parent=1 // pred_check
      _
    $region31: #{tpu_custom_call.1} parent=1 // pred_check_branch
      %248 = sbr.rel (0) target = $region33
    $region32: #{tpu_custom_call.1} parent=1 // pred_region
      %s250 = ssub.s32 256, 256
      %251 = vsyncadd [#allocation5], %s250
      %s252 = sshll.u32 [#allocation9], 4
      %s253 = int_to_ptr.vmem [resolvable:$true] %s252
      %258 = dma.vmem_to_hbm [thread:$0]  %s253, 256, %s3, [#allocation5], 128, 128, 8
    $region33: #{tpu_custom_call.1} parent=1 // pred_fallthru
      _
    // Predicated region
    $region34: #{tpu_custom_call.1} parent=1 // pred_check
      _
    $region35: #{tpu_custom_call.1} parent=1 // pred_check_branch
      %260 = sbr.rel (0) target = $region37
    $region36: #{tpu_custom_call.1} parent=1 // pred_region
      %261 = dma.done [#allocation5], 256
    $region37: #{tpu_custom_call.1} parent=1 // pred_fallthru
      _
    %262 = vsyncpa [#allocation4], 1
    %263 = vsyncpa [#allocation7], 1
    %264 = vsyncpa [#allocation5], 1

</llo_original>
